<compile_context>
chip_gen: v5e
topology: v5e:2x2
jax: 0.10.0
libtpu: 0.0.40
codegen_flags: <defaults>
</compile_context>

<pallas_src>
import math

import jax
import jax.numpy as jnp
from jax.experimental import pallas as pl
from jax.experimental.pallas import tpu as pltpu

BN_EPS = 1e-5
_LANES = 128


def _round_up(x, m):
    return (x + m - 1) // m * m


def resclassifier_kernel(
    x_ref,        # (TB, C, H*W)        input tile (pipelined)
    w_bb_ref,     # (C, F_bb)           backbone linear weight (1/HW pre-folded)
    b_bb_ref,     # (1, F_bb)
    w_fc1_ref,    # (F_bb, BOTTLE)      fc1 weight with BN folded in
    b_fc1_ref,    # (1, BOTTLE)         fc1 bias with BN folded in
    w_head_ref,   # (BOTTLE, NC_PAD)    head weight, zero-padded to 128 lanes
    b_head_ref,   # (1, NC_PAD)
    out_ref,      # (TB, NC_PAD)
):
    # synthetic backbone: global average pool (scale folded into w_bb) -> linear -> relu
    feats = jnp.sum(x_ref[...], axis=-1).astype(jnp.float32)          # (TB, C)
    h = jnp.dot(feats, w_bb_ref[...],
                preferred_element_type=jnp.float32) + b_bb_ref[...]
    h = jnp.maximum(h, 0.0)                                           # (TB, F_bb)

    # fc1: Linear (eval BatchNorm folded into weight/bias) -> ReLU -> Dropout(identity)
    z = jnp.dot(h, w_fc1_ref[...],
                preferred_element_type=jnp.float32) + b_fc1_ref[...]
    z = jnp.maximum(z, 0.0)                                           # (TB, BOTTLE)

    # head: Linear(bottleneck -> padded num_classes)
    out_ref[...] = (jnp.dot(z, w_head_ref[...],
                            preferred_element_type=jnp.float32)
                    + b_head_ref[...]).astype(out_ref.dtype)


def res_classifier_forward(x_nchw, params, *, input_dtype=jnp.float32):
    """x_nchw: (B, C, H, W). Returns predictions (B, num_classes) in float32.

    input_dtype: pass jnp.bfloat16 on v6e/v7x to halve HBM traffic on x (the
    bandwidth-bound tensor); matmul accumulation and post-matmul math stay f32.
    """
    B, C, H, W = x_nchw.shape
    HW = H * W
    (w_bb, b_bb, w_fc1, b_fc1, gamma, beta, r_mean, r_var, w_head, b_head) = params
    f_bb = w_bb.shape[1]
    bottle = w_fc1.shape[1]
    num_classes = w_head.shape[1]
    nc_pad = _round_up(num_classes, _LANES)

    # ---- host-side folding / padding (done once, outside the kernel) ----
    w_bb_f = (w_bb / float(HW)).astype(jnp.float32)                    # fold 1/HW pool scale
    scale = gamma * jax.lax.rsqrt(r_var + BN_EPS)                      # fold eval BatchNorm
    w_fc1_f = (w_fc1 * scale).astype(jnp.float32)
    b_fc1_f = ((b_fc1 - r_mean) * scale + beta).astype(jnp.float32)
    w_head_p = jnp.zeros((bottle, nc_pad), jnp.float32).at[:, :num_classes].set(w_head)
    b_head_p = jnp.zeros((1, nc_pad), jnp.float32).at[:, :num_classes].set(b_head)

    weights = (w_bb_f, b_bb.astype(jnp.float32), w_fc1_f, b_fc1_f, w_head_p, b_head_p)
    weight_bytes = sum(int(a.size) * a.dtype.itemsize for a in weights)

    # ---- batch tile sized for VMEM (x is the only large, streamed tensor) ----
    itemsize = jnp.dtype(input_dtype).itemsize
    row_bytes = C * HW * itemsize
    x_budget = 16 * 1024 * 1024                        # double-buffered x budget
    tb_cap = min(256, max(8, (x_budget // (2 * row_bytes)) // 8 * 8))
    b_pad = _round_up(B, 8)
    tb = min(tb_cap, b_pad)
    b_pad = _round_up(b_pad, tb)
    nb = b_pad // tb

    x = x_nchw.reshape(B, C, HW).astype(input_dtype)
    if b_pad != B:
        x = jnp.pad(x, ((0, b_pad - B), (0, 0), (0, 0)))

    # x / out are tiled over batch (pipelined); weights use a constant index_map so
    # they are fetched once and stay VMEM-resident across grid iterations.
    x_spec = pl.BlockSpec((tb, C, HW), lambda b: (b, 0, 0))
    w_specs = [pl.BlockSpec(a.shape, lambda b: (0, 0)) for a in weights]
    out_spec = pl.BlockSpec((tb, nc_pad), lambda b: (b, 0))

    x_tile_bytes = tb * C * HW * itemsize
    out_tile_bytes = tb * nc_pad * 4
    vmem_need = 2 * (x_tile_bytes + out_tile_bytes) + weight_bytes + (2 << 20)
    vmem_limit = int(min(max(vmem_need, 32 << 20), 48 << 20))   # <= v7x 64 MiB physical

    flops = 2 * b_pad * (C * f_bb + f_bb * bottle + bottle * nc_pad) + b_pad * C * HW
    bytes_accessed = int(x.size) * itemsize + weight_bytes + b_pad * nc_pad * 4

    out = pl.pallas_call(
        resclassifier_kernel,
        out_shape=jax.ShapeDtypeStruct((b_pad, nc_pad), jnp.float32),
        grid=(nb,),
        in_specs=[x_spec] + w_specs,
        out_specs=out_spec,
        compiler_params=pltpu.CompilerParams(
            dimension_semantics=("parallel",),
            vmem_limit_bytes=vmem_limit),
        cost_estimate=pl.CostEstimate(flops=int(flops), transcendentals=0,
                                      bytes_accessed=int(bytes_accessed)),
    )(x, *weights)

    return out[:B, :num_classes]


def make_params(key, in_channels, backbone_out, bottleneck_dim, num_classes):
    """Deterministic PyTorch-default-style init (uniform ±1/sqrt(fan_in))."""
    ks = jax.random.split(key, 6)

    def linear(k, fan_in, fan_out):
        kw, kb = jax.random.split(k)
        bound = 1.0 / math.sqrt(fan_in)
        w = jax.random.uniform(kw, (fan_in, fan_out), jnp.float32, -bound, bound)
        b = jax.random.uniform(kb, (1, fan_out), jnp.float32, -bound, bound)
        return w, b

    w_bb, b_bb = linear(ks[0], in_channels, backbone_out)
    w_fc1, b_fc1 = linear(ks[1], backbone_out, bottleneck_dim)
    w_head, b_head = linear(ks[2], bottleneck_dim, num_classes)

    # BatchNorm1d defaults: gamma=1, beta=0, running_mean=0, running_var=1
    gamma = jnp.ones((1, bottleneck_dim), jnp.float32)
    beta = jnp.zeros((1, bottleneck_dim), jnp.float32)
    r_mean = jnp.zeros((1, bottleneck_dim), jnp.float32)
    r_var = jnp.ones((1, bottleneck_dim), jnp.float32)

    return (w_bb, b_bb, w_fc1, b_fc1, gamma, beta, r_mean, r_var, w_head, b_head)


def reference_forward(x_nchw, params):
    """Plain-JAX reference mirroring the PyTorch eval-mode forward (unfolded)."""
    (w_bb, b_bb, w_fc1, b_fc1, gamma, beta, r_mean, r_var, w_head, b_head) = params
    feats = jnp.mean(x_nchw, axis=(2, 3))
    h = jnp.maximum(feats @ w_bb + b_bb, 0.0)
    z = h @ w_fc1 + b_fc1
    z = (z - r_mean) / jnp.sqrt(r_var + BN_EPS) * gamma + beta
    z = jnp.maximum(z, 0.0)
    return z @ w_head + b_head


if __name__ == "__main__":
    key = jax.random.PRNGKey(0)
    k_x, k_p = jax.random.split(key)

    B, C, H, W = 2, 4, 16, 16
    backbone_out = 64
    bottleneck_dim = 152
    num_classes = 10

    x = jax.random.normal(k_x, (B, C, H, W), jnp.float32)
    params = make_params(k_p, C, backbone_out, bottleneck_dim, num_classes)

    preds = res_classifier_forward(x, params)
    preds = jax.block_until_ready(preds)

    ref = reference_forward(x, params)
    assert preds.shape == (B, num_classes)
    assert jnp.allclose(preds, ref, atol=1e-4, rtol=1e-4), "mismatch vs reference"

    print("KERNEL_OK")
</pallas_src>

<mosaic_0001>
module attributes {stable_mosaic.version = 11 : i64} {
  func.func @resclassifier_kernel(%arg0: i32, %arg1: memref<8x4x256xf32, #tpu.memory_space<vmem>>, %arg2: memref<4x64xf32, #tpu.memory_space<vmem>>, %arg3: memref<1x64xf32, #tpu.memory_space<vmem>>, %arg4: memref<64x152xf32, #tpu.memory_space<vmem>>, %arg5: memref<1x152xf32, #tpu.memory_space<vmem>>, %arg6: memref<152x128xf32, #tpu.memory_space<vmem>>, %arg7: memref<1x128xf32, #tpu.memory_space<vmem>>, %arg8: memref<8x128xf32, #tpu.memory_space<vmem>>) attributes {dimension_semantics = [#tpu.dimension_semantics<parallel>], iteration_bounds = array<i64: 1>, scalar_prefetch = 0 : i64, scratch_operands = 0 : i64, tpu.core_type = #tpu.core_type<tc>, window_params = [{transform_indices = @transform_0, window_bounds = array<i64: 8, 4, 256>}, {pipeline_mode = #tpu.pipeline_mode<synchronous>, transform_indices = @transform_1, window_bounds = array<i64: 4, 64>}, {pipeline_mode = #tpu.pipeline_mode<synchronous>, transform_indices = @transform_2, window_bounds = array<i64: 1, 64>}, {pipeline_mode = #tpu.pipeline_mode<synchronous>, transform_indices = @transform_3, window_bounds = array<i64: 64, 152>}, {pipeline_mode = #tpu.pipeline_mode<synchronous>, transform_indices = @transform_4, window_bounds = array<i64: 1, 152>}, {pipeline_mode = #tpu.pipeline_mode<synchronous>, transform_indices = @transform_5, window_bounds = array<i64: 152, 128>}, {pipeline_mode = #tpu.pipeline_mode<synchronous>, transform_indices = @transform_6, window_bounds = array<i64: 1, 128>}, {transform_indices = @transform_7, window_bounds = array<i64: 8, 128>}]} {
    %c0 = arith.constant 0 : index
    %c0_0 = arith.constant 0 : index
    %c0_1 = arith.constant 0 : index
    %0 = vector.load %arg1[%c0, %c0_0, %c0_1] : memref<8x4x256xf32, #tpu.memory_space<vmem>>, vector<8x4x256xf32>
    %cst = arith.constant dense<0.000000e+00> : vector<8x4xf32>
    %1 = vector.multi_reduction <add>, %0, %cst [2] : vector<8x4x256xf32> to vector<8x4xf32>
    %c0_2 = arith.constant 0 : index
    %c0_3 = arith.constant 0 : index
    %2 = vector.load %arg2[%c0_2, %c0_3] : memref<4x64xf32, #tpu.memory_space<vmem>>, vector<4x64xf32>
    %cst_4 = arith.constant dense<0.000000e+00> : vector<8x64xf32>
    %3 = tpu.matmul %1, %2, %cst_4 {dimension_numbers = #tpu.dot_dimension_numbers<[1], [0], [0], [1], [0, 0, 1, 1], [], []>} : vector<8x4xf32>, vector<4x64xf32>, vector<8x64xf32> -> vector<8x64xf32>
    %c0_5 = arith.constant 0 : index
    %c0_6 = arith.constant 0 : index
    %4 = vector.load %arg3[%c0_5, %c0_6] : memref<1x64xf32, #tpu.memory_space<vmem>>, vector<1x64xf32>
    %5 = vector.broadcast %4 : vector<1x64xf32> to vector<8x64xf32>
    %6 = arith.addf %3, %5 : vector<8x64xf32>
    %cst_7 = arith.constant 0.000000e+00 : f32
    %7 = vector.broadcast %cst_7 : f32 to vector<8x64xf32>
    %8 = arith.maximumf %6, %7 : vector<8x64xf32>
    %c0_8 = arith.constant 0 : index
    %c0_9 = arith.constant 0 : index
    %9 = vector.load %arg4[%c0_8, %c0_9] : memref<64x152xf32, #tpu.memory_space<vmem>>, vector<64x152xf32>
    %cst_10 = arith.constant dense<0.000000e+00> : vector<8x152xf32>
    %10 = tpu.matmul %8, %9, %cst_10 {dimension_numbers = #tpu.dot_dimension_numbers<[1], [0], [0], [1], [0, 0, 1, 1], [], []>} : vector<8x64xf32>, vector<64x152xf32>, vector<8x152xf32> -> vector<8x152xf32>
    %c0_11 = arith.constant 0 : index
    %c0_12 = arith.constant 0 : index
    %11 = vector.load %arg5[%c0_11, %c0_12] : memref<1x152xf32, #tpu.memory_space<vmem>>, vector<1x152xf32>
    %12 = vector.broadcast %11 : vector<1x152xf32> to vector<8x152xf32>
    %13 = arith.addf %10, %12 : vector<8x152xf32>
    %cst_13 = arith.constant 0.000000e+00 : f32
    %14 = vector.broadcast %cst_13 : f32 to vector<8x152xf32>
    %15 = arith.maximumf %13, %14 : vector<8x152xf32>
    %c0_14 = arith.constant 0 : index
    %c0_15 = arith.constant 0 : index
    %16 = vector.load %arg6[%c0_14, %c0_15] : memref<152x128xf32, #tpu.memory_space<vmem>>, vector<152x128xf32>
    %cst_16 = arith.constant dense<0.000000e+00> : vector<8x128xf32>
    %17 = tpu.matmul %15, %16, %cst_16 {dimension_numbers = #tpu.dot_dimension_numbers<[1], [0], [0], [1], [0, 0, 1, 1], [], []>} : vector<8x152xf32>, vector<152x128xf32>, vector<8x128xf32> -> vector<8x128xf32>
    %c0_17 = arith.constant 0 : index
    %c0_18 = arith.constant 0 : index
    %18 = vector.load %arg7[%c0_17, %c0_18] : memref<1x128xf32, #tpu.memory_space<vmem>>, vector<1x128xf32>
    %19 = vector.broadcast %18 : vector<1x128xf32> to vector<8x128xf32>
    %20 = arith.addf %17, %19 : vector<8x128xf32>
    %c0_19 = arith.constant 0 : index
    %c0_20 = arith.constant 0 : index
    %21 = vector.load %arg8[%c0_19, %c0_20] : memref<8x128xf32, #tpu.memory_space<vmem>>, vector<8x128xf32>
    tpu.vector_store %arg8[%c0_19, %c0_20], %20 {strides = array<i32>} : memref<8x128xf32, #tpu.memory_space<vmem>>, vector<8x128xf32>,
    return
  }
  func.func @transform_0(%arg0: i32) -> (i32, i32, i32) {
    %c0_i32 = arith.constant 0 : i32
    %c0_i32_0 = arith.constant 0 : i32
    %c0_i32_1 = arith.constant 0 : i32
    return %arg0, %c0_i32, %c0_i32_0 : i32, i32, i32
  }
  func.func @transform_1(%arg0: i32) -> (i32, i32) {
    %c0_i32 = arith.constant 0 : i32
    %c0_i32_0 = arith.constant 0 : i32
    %c0_i32_1 = arith.constant 0 : i32
    return %c0_i32, %c0_i32_0 : i32, i32
  }
  func.func @transform_2(%arg0: i32) -> (i32, i32) {
    %c0_i32 = arith.constant 0 : i32
    %c0_i32_0 = arith.constant 0 : i32
    %c0_i32_1 = arith.constant 0 : i32
    return %c0_i32, %c0_i32_0 : i32, i32
  }
  func.func @transform_3(%arg0: i32) -> (i32, i32) {
    %c0_i32 = arith.constant 0 : i32
    %c0_i32_0 = arith.constant 0 : i32
    %c0_i32_1 = arith.constant 0 : i32
    return %c0_i32, %c0_i32_0 : i32, i32
  }
  func.func @transform_4(%arg0: i32) -> (i32, i32) {
    %c0_i32 = arith.constant 0 : i32
    %c0_i32_0 = arith.constant 0 : i32
    %c0_i32_1 = arith.constant 0 : i32
    return %c0_i32, %c0_i32_0 : i32, i32
  }
  func.func @transform_5(%arg0: i32) -> (i32, i32) {
    %c0_i32 = arith.constant 0 : i32
    %c0_i32_0 = arith.constant 0 : i32
    %c0_i32_1 = arith.constant 0 : i32
    return %c0_i32, %c0_i32_0 : i32, i32
  }
  func.func @transform_6(%arg0: i32) -> (i32, i32) {
    %c0_i32 = arith.constant 0 : i32
    %c0_i32_0 = arith.constant 0 : i32
    %c0_i32_1 = arith.constant 0 : i32
    return %c0_i32, %c0_i32_0 : i32, i32
  }
  func.func @transform_7(%arg0: i32) -> (i32, i32) {
    %c0_i32 = arith.constant 0 : i32
    %c0_i32_0 = arith.constant 0 : i32
    return %arg0, %c0_i32 : i32, i32
  }
}

</mosaic_0001>

<llo_original>
// kernel: tpu_custom_call.1
$region0: #{tpu_custom_call.1}
  #allocation0 [shape = 'u32[]', space=smem, size = 0x4, offset = 0x4, fixed_abs, tag = 'smem constant byte address 0x4 - core index']
  #allocation1 [shape = 'u32[72,128]{1,0:T(1,128)}', space=vmem, size = 0x9000, scoped, tag = 'internal scratch']
  %s0 = inlined_call_operand.hbm [shape: f32[8,4,256], index: 0, kind: input, shape index: {}]
  %s1 = inlined_call_operand.hbm [shape: f32[4,64], index: 1, kind: input, shape index: {}]
  %s2 = inlined_call_operand.vmem [shape: f32[1,64], index: 2, kind: input, shape index: {}]
  %s3 = inlined_call_operand.hbm [shape: f32[64,152], index: 3, kind: input, shape index: {}]
  %s4 = inlined_call_operand.vmem [shape: f32[1,152], index: 4, kind: input, shape index: {}]
  %s5 = inlined_call_operand.hbm [shape: f32[152,128], index: 5, kind: input, shape index: {}]
  %s6 = inlined_call_operand.vmem [shape: f32[1,128], index: 6, kind: input, shape index: {}]
  %s7 = inlined_call_operand.hbm [shape: f32[8,128], index: 7, kind: output, shape index: {}]
  %s8 = sld [smem:[#allocation0]]
  $region54: #{tpu_custom_call.1} parent=0
    _
  %s10 = ssub.s32 1, %s8
  %s11 = scalar_select 0, %s10, %s8
  $region1: #{tpu_custom_call.1} parent=0
    #allocation2 [shape = 'u8[32768]{0}', space=vmem, size = 0x8000, scoped, tag = 'input window, operand 0, single buffered']
    #allocation3 [shape = 's32[1]{0}', space=sflag, size = 0x4, scoped, tag = 'scoped memory for tpu_custom_call.1']
    #allocation4 [shape = 's32[1]{0}', space=sflag, size = 0x4, scoped, tag = 'scoped memory for tpu_custom_call.1']
    #allocation5 [shape = 'u8[2048]{0}', space=vmem, size = 0x800, scoped, tag = 'input window, operand 1, single buffered']
    #allocation6 [shape = 's32[1]{0}', space=sflag, size = 0x4, scoped, tag = 'scoped memory for tpu_custom_call.1']
    #allocation7 [shape = 'u8[65536]{0}', space=vmem, size = 0x10000, scoped, tag = 'input window, operand 3, single buffered']
    #allocation8 [shape = 'u8[77824]{0}', space=vmem, size = 0x13000, scoped, tag = 'input window, operand 5, single buffered']
    #allocation9 [shape = 's32[1]{0}', space=sflag, size = 0x4, scoped, tag = 'scoped memory for tpu_custom_call.1']
    #allocation10 [shape = 'u8[4096]{0}', space=vmem, size = 0x1000, scoped, tag = 'output window, operand 0, single buffered']
    %12 = vsyncpa [#allocation3], 0
    %13 = vsyncpa [#allocation6], 0
    %14 = vsyncpa [#allocation9], 0
    %15 = vsyncpa [#allocation4], 0
    // Predicated region
    $region2: #{tpu_custom_call.1} parent=1 // pred_check
      _
    $region3: #{tpu_custom_call.1} parent=1 // pred_check_branch
      %17 = sbr.rel (0) target = $region5
    $region4: #{tpu_custom_call.1} parent=1 // pred_region
      %19 = vsyncadd [#allocation3], 0
      %s20 = sshll.u32 %s0, 4
      %s21 = int_to_ptr.hbm [resolvable:$true] %s20
      %s22 = sshll.u32 [#allocation2], 4
      %s23 = int_to_ptr.vmem [resolvable:$true] %s22
      %28 = dma.hbm_to_vmem [thread:$0]  %s21, 1024, %s23, [#allocation3], 128, 128, 8
    $region5: #{tpu_custom_call.1} parent=1 // pred_fallthru
      _
    // Predicated region
    $region6: #{tpu_custom_call.1} parent=1 // pred_check
      _
    $region7: #{tpu_custom_call.1} parent=1 // pred_check_branch
      %30 = sbr.rel (0) target = $region9
    $region8: #{tpu_custom_call.1} parent=1 // pred_region
      %32 = vsyncadd [#allocation6], 0
      %s34 = sshll.u32 %s1, 4
      %s35 = int_to_ptr.hbm [resolvable:$true] %s34
      %s36 = sshll.u32 [#allocation5], 4
      %s37 = int_to_ptr.vmem [resolvable:$true] %s36
      %39 = dma.hbm_to_vmem [thread:$0]  %s35, 64, %s37, [#allocation6]
    $region9: #{tpu_custom_call.1} parent=1 // pred_fallthru
      _
    // Predicated region
    $region10: #{tpu_custom_call.1} parent=1 // pred_check
      _
    $region11: #{tpu_custom_call.1} parent=1 // pred_check_branch
      %41 = sbr.rel (0) target = $region13
    $region12: #{tpu_custom_call.1} parent=1 // pred_region
      _
    $region13: #{tpu_custom_call.1} parent=1 // pred_fallthru
      _
    // Predicated region
    $region14: #{tpu_custom_call.1} parent=1 // pred_check
      _
    $region15: #{tpu_custom_call.1} parent=1 // pred_check_branch
      %43 = sbr.rel (0) target = $region17
    $region16: #{tpu_custom_call.1} parent=1 // pred_region
      %45 = vsyncadd [#allocation6], 0
      %s46 = sshll.u32 %s3, 4
      %s47 = int_to_ptr.hbm [resolvable:$true] %s46
      %s48 = sshll.u32 [#allocation7], 4
      %s49 = int_to_ptr.vmem [resolvable:$true] %s48
      %54 = dma.hbm_to_vmem [thread:$0]  %s47, 2048, %s49, [#allocation6], 256, 256, 16
    $region17: #{tpu_custom_call.1} parent=1 // pred_fallthru
      _
    // Predicated region
    $region18: #{tpu_custom_call.1} parent=1 // pred_check
      _
    $region19: #{tpu_custom_call.1} parent=1 // pred_check_branch
      %56 = sbr.rel (0) target = $region21
    $region20: #{tpu_custom_call.1} parent=1 // pred_region
      _
    $region21: #{tpu_custom_call.1} parent=1 // pred_fallthru
      _
    // Predicated region
    $region22: #{tpu_custom_call.1} parent=1 // pred_check
      _
    $region23: #{tpu_custom_call.1} parent=1 // pred_check_branch
      %58 = sbr.rel (0) target = $region25
    $region24: #{tpu_custom_call.1} parent=1 // pred_region
      %60 = vsyncadd [#allocation9], 0
      %s61 = sshll.u32 %s5, 4
      %s62 = int_to_ptr.hbm [resolvable:$true] %s61
      %s63 = sshll.u32 [#allocation8], 4
      %s64 = int_to_ptr.vmem [resolvable:$true] %s63
      %69 = dma.hbm_to_vmem [thread:$0]  %s62, 2432, %s64, [#allocation9], 128, 128, 8
    $region25: #{tpu_custom_call.1} parent=1 // pred_fallthru
      _
    // Predicated region
    $region26: #{tpu_custom_call.1} parent=1 // pred_check
      _
    $region27: #{tpu_custom_call.1} parent=1 // pred_check_branch
      %71 = sbr.rel (0) target = $region29
    $region28: #{tpu_custom_call.1} parent=1 // pred_region
      _
    $region29: #{tpu_custom_call.1} parent=1 // pred_fallthru
      _
    // Predicated region
    $region30: #{tpu_custom_call.1} parent=1 // pred_check
      _
    $region31: #{tpu_custom_call.1} parent=1 // pred_check_branch
      %73 = sbr.rel (0) target = $region33
    $region32: #{tpu_custom_call.1} parent=1 // pred_region
      %75 = dma.done [#allocation3], 1024
    $region33: #{tpu_custom_call.1} parent=1 // pred_fallthru
      _
    // Predicated region
    $region34: #{tpu_custom_call.1} parent=1 // pred_check
      _
    $region35: #{tpu_custom_call.1} parent=1 // pred_check_branch
      %77 = sbr.rel (0) target = $region37
    $region36: #{tpu_custom_call.1} parent=1 // pred_region
      %79 = dma.done [#allocation6], 64
    $region37: #{tpu_custom_call.1} parent=1 // pred_fallthru
      _
    // Predicated region
    $region38: #{tpu_custom_call.1} parent=1 // pred_check
      _
    $region39: #{tpu_custom_call.1} parent=1 // pred_check_branch
      %81 = sbr.rel (0) target = $region41
    $region40: #{tpu_custom_call.1} parent=1 // pred_region
      %83 = dma.done [#allocation6], 2048
    $region41: #{tpu_custom_call.1} parent=1 // pred_fallthru
      _
    // Predicated region
    $region42: #{tpu_custom_call.1} parent=1 // pred_check
      _
    $region43: #{tpu_custom_call.1} parent=1 // pred_check_branch
      %85 = sbr.rel (0) target = $region45
    $region44: #{tpu_custom_call.1} parent=1 // pred_region
      %87 = dma.done [#allocation9], 2432
    $region45: #{tpu_custom_call.1} parent=1 // pred_fallthru
      _
    %v88 = vld [vmem:[#allocation2] sm:$0xff]
    %v89 = vld [vmem:[#allocation2 + $0x8] sm:$0xff]
    %v90 = vld [vmem:[#allocation2 + $0x10] sm:$0xff]
    %v91 = vld [vmem:[#allocation2 + $0x18] sm:$0xff]
    %v92 = vld [vmem:[#allocation2 + $0x20] sm:$0xff]
    %v93 = vld [vmem:[#allocation2 + $0x28] sm:$0xff]
    %v94 = vld [vmem:[#allocation2 + $0x30] sm:$0xff]
    %v95 = vld [vmem:[#allocation2 + $0x38] sm:$0xff]
    %104 = vst [vmem:[#allocation1] ss:$2 sm:$0xff] %v88
    %v105 = vld.sshfl [vmem:[#allocation1] sm:$0xff pattern:$0x75316420]
    %v106 = vld.sshfl [vmem:[#allocation1 + $0x8] sm:$0xff pattern:$0x75316420]
    %s107 = scalar_lea.vmem [#allocation1], 16
    %108 = vst [vmem:[%s107] ss:$2 sm:$0xff] %v89
    %v109 = vld.sshfl [vmem:[#allocation1 + $0x10] sm:$0xff pattern:$0x75316420]
    %v110 = vld.sshfl [vmem:[#allocation1 + $0x18] sm:$0xff pattern:$0x75316420]
    %s111 = scalar_lea.vmem [#allocation1], 32
    %112 = vst [vmem:[%s111] ss:$2 sm:$0xff] %v90
    %v113 = vld.sshfl [vmem:[#allocation1 + $0x20] sm:$0xff pattern:$0x75316420]
    %v114 = vld.sshfl [vmem:[#allocation1 + $0x28] sm:$0xff pattern:$0x75316420]
    %s115 = scalar_lea.vmem [#allocation1], 48
    %116 = vst [vmem:[%s115] ss:$2 sm:$0xff] %v91
    %v117 = vld.sshfl [vmem:[#allocation1 + $0x30] sm:$0xff pattern:$0x75316420]
    %v118 = vld.sshfl [vmem:[#allocation1 + $0x38] sm:$0xff pattern:$0x75316420]
    %119 = vst [vmem:[#allocation1] ss:$2 sm:$0xff] %v92
    %v120 = vld.sshfl [vmem:[#allocation1] sm:$0xff pattern:$0x75316420]
    %v121 = vld.sshfl [vmem:[#allocation1 + $0x8] sm:$0xff pattern:$0x75316420]
    %122 = vst [vmem:[%s107] ss:$2 sm:$0xff] %v93
    %v123 = vld.sshfl [vmem:[#allocation1 + $0x10] sm:$0xff pattern:$0x75316420]
    %v124 = vld.sshfl [vmem:[#allocation1 + $0x18] sm:$0xff pattern:$0x75316420]
    %125 = vst [vmem:[%s111] ss:$2 sm:$0xff] %v94
    %v126 = vld.sshfl [vmem:[#allocation1 + $0x20] sm:$0xff pattern:$0x75316420]
    %v127 = vld.sshfl [vmem:[#allocation1 + $0x28] sm:$0xff pattern:$0x75316420]
    %128 = vst [vmem:[%s115] ss:$2 sm:$0xff] %v95
    %v129 = vld.sshfl [vmem:[#allocation1 + $0x30] sm:$0xff pattern:$0x75316420]
    %v130 = vld.sshfl [vmem:[#allocation1 + $0x38] sm:$0xff pattern:$0x75316420]
    %vm147 = vcmask 1043456
    %v148 = vsel %vm147, %v105, 0.0
    %v149 = vsel %vm147, %v106, 0.0
    %v150 = vadd.f32 %v148, %v149
    %151 = vadd.xlane.f32.xlu0 %v150
    %v152 = vpop.xlane.xlu0 %151
    %v153 = vsel %vm147, %v109, 0.0
    %v154 = vsel %vm147, %v110, 0.0
    %v155 = vadd.f32 %v153, %v154
    %156 = vadd.xlane.f32.xlu0 %v155
    %v157 = vpop.xlane.xlu0 %156
    %v158 = vsel %vm147, %v113, 0.0
    %v159 = vsel %vm147, %v114, 0.0
    %v160 = vadd.f32 %v158, %v159
    %161 = vadd.xlane.f32.xlu0 %v160
    %v162 = vpop.xlane.xlu0 %161
    %v163 = vsel %vm147, %v117, 0.0
    %v164 = vsel %vm147, %v118, 0.0
    %v165 = vadd.f32 %v163, %v164
    %166 = vadd.xlane.f32.xlu0 %v165
    %v167 = vpop.xlane.xlu0 %166
    %v168 = vsel %vm147, %v120, 0.0
    %v169 = vsel %vm147, %v121, 0.0
    %v170 = vadd.f32 %v168, %v169
    %171 = vadd.xlane.f32.xlu0 %v170
    %v172 = vpop.xlane.xlu0 %171
    %v173 = vsel %vm147, %v123, 0.0
    %v174 = vsel %vm147, %v124, 0.0
    %v175 = vadd.f32 %v173, %v174
    %176 = vadd.xlane.f32.xlu0 %v175
    %v177 = vpop.xlane.xlu0 %176
    %v178 = vsel %vm147, %v126, 0.0
    %v179 = vsel %vm147, %v127, 0.0
    %v180 = vadd.f32 %v178, %v179
    %181 = vadd.xlane.f32.xlu0 %v180
    %v182 = vpop.xlane.xlu0 %181
    %v183 = vsel %vm147, %v129, 0.0
    %v184 = vsel %vm147, %v130, 0.0
    %v185 = vadd.f32 %v183, %v184
    %186 = vadd.xlane.f32.xlu0 %v185
    %v187 = vpop.xlane.xlu0 %186
    %v188 = vld [vmem:[#allocation5] sm:$0xf]
    %v189 = vld [vmem:[%s2] sm:$0x1]
    %v191 = vperm.slane %v189, 0
    %v201 = vlaneseq
    %v202 = vand.u32 %v201, 127
    %v203 = vperm.slane %v152, %v202
    %v204 = vperm.slane %v157, %v202
    %v205 = vperm.slane %v162, %v202
    %v206 = vperm.slane %v167, %v202
    %v207 = vperm.slane %v172, %v202
    %v208 = vperm.slane %v177, %v202
    %v209 = vperm.slane %v182, %v202
    %v210 = vperm.slane %v187, %v202
    %vm211 = vcmask 1041409
    %v212 = vsel %vm211, %v204, %v203
    %vm213 = vcmask 1042434
    %v214 = vsel %vm213, %v205, %v212
    %vm215 = vcmask 1043459
    %v216 = vsel %vm215, %v206, %v214
    %vm217 = vcmask 1044484
    %v218 = vsel %vm217, %v207, %v216
    %vm219 = vcmask 1045509
    %v220 = vsel %vm219, %v208, %v218
    %vm221 = vcmask 1046534
    %v222 = vsel %vm221, %v209, %v220
    %vm223 = vcmask 1047559
    %v224 = vsel %vm223, %v210, %v222
    %vm225 = vcmask 31744
    %v226 = vsel %vm225, %v224, 0
    %v229 = vsel %vm147, %v188, 0
    %231 = vmatpush.msra.mxu0 0.0
    %232 = vmatpush.msra.mxu0 0.0
    %233 = vmatpush.msra.mxu0 0.0
    %234 = vmatpush.msra.mxu0 0.0
    %235 = vmatpush.msra.mxu0 0.0
    %236 = vmatpush.msra.mxu0 0.0
    %237 = vmatpush.msra.mxu0 0.0
    %238 = vmatpush.msra.mxu0 0.0
    %239 = vmatpush.msra.mxu0 0.0
    %240 = vmatpush.msra.mxu0 0.0
    %241 = vmatpush.msra.mxu0 0.0
    %242 = vmatpush.msra.mxu0 0.0
    %243 = vmatpush.msra.mxu0 0.0
    %244 = vmatpush.msra.mxu0 0.0
    %245 = vmatpush.msra.mxu0 0.0
    %246 = vmatpush.msra.mxu0 %v229
    %247 = vmatmul.f32.gmra.mxu0 %v226
    %v248 = vpop.f32.mrf.mxu0
    %v249 = vadd.f32 %v191, %v248
    %250 = vdwg.mxu0
    %v251 = vmax.f32 %v249, 0.0
    %v252 = vld [vmem:[#allocation7] sm:$0xff]
    %v253 = vld [vmem:[#allocation7 + $0x8] sm:$0xff]
    %v254 = vld [vmem:[#allocation7 + $0x10] sm:$0xff]
    %v255 = vld [vmem:[#allocation7 + $0x18] sm:$0xff]
    %v256 = vld [vmem:[#allocation7 + $0x20] sm:$0xff]
    %v257 = vld [vmem:[#allocation7 + $0x28] sm:$0xff]
    %v258 = vld [vmem:[#allocation7 + $0x30] sm:$0xff]
    %v259 = vld [vmem:[#allocation7 + $0x38] sm:$0xff]
    %v260 = vld [vmem:[#allocation7 + $0x40] sm:$0xff]
    %v261 = vld [vmem:[#allocation7 + $0x48] sm:$0xff]
    %v262 = vld [vmem:[#allocation7 + $0x50] sm:$0xff]
    %v263 = vld [vmem:[#allocation7 + $0x58] sm:$0xff]
    %v264 = vld [vmem:[#allocation7 + $0x60] sm:$0xff]
    %v265 = vld [vmem:[#allocation7 + $0x68] sm:$0xff]
    %v266 = vld [vmem:[#allocation7 + $0x70] sm:$0xff]
    %v267 = vld [vmem:[#allocation7 + $0x78] sm:$0xff]
    %v268 = vld [vmem:[%s4] sm:$0x3]
    %v270 = vperm.slane %v268, 0
    %v271 = vperm.slane %v268, 1
    %vm274 = vcmask 523264
    %v276 = vsel %vm274, %v251, 0
    %278 = vmatpush.msra.mxu0 0.0
    %279 = vmatpush.msra.mxu0 0.0
    %280 = vmatpush.msra.mxu0 0.0
    %281 = vmatpush.msra.mxu0 0.0
    %282 = vmatpush.msra.mxu0 0.0
    %283 = vmatpush.msra.mxu0 0.0
    %284 = vmatpush.msra.mxu0 0.0
    %285 = vmatpush.msra.mxu0 0.0
    %286 = vmatpush.msra.mxu0 %v266
    %287 = vmatpush.msra.mxu0 %v264
    %288 = vmatpush.msra.mxu0 %v262
    %289 = vmatpush.msra.mxu0 %v260
    %290 = vmatpush.msra.mxu0 %v258
    %291 = vmatpush.msra.mxu0 %v256
    %292 = vmatpush.msra.mxu0 %v254
    %293 = vmatpush.msra.mxu0 %v252
    %294 = vmatmul.f32.gmra.mxu0 %v276
    %v295 = vpop.f32.mrf.mxu0
    %v296 = vadd.f32 %v270, %v295
    %297 = vdwg.mxu0
    %298 = vmatpush.msra.mxu0 0.0
    %299 = vmatpush.msra.mxu0 0.0
    %300 = vmatpush.msra.mxu0 0.0
    %301 = vmatpush.msra.mxu0 0.0
    %302 = vmatpush.msra.mxu0 0.0
    %303 = vmatpush.msra.mxu0 0.0
    %304 = vmatpush.msra.mxu0 0.0
    %305 = vmatpush.msra.mxu0 0.0
    %306 = vmatpush.msra.mxu0 %v267
    %307 = vmatpush.msra.mxu0 %v265
    %308 = vmatpush.msra.mxu0 %v263
    %309 = vmatpush.msra.mxu0 %v261
    %310 = vmatpush.msra.mxu0 %v259
    %311 = vmatpush.msra.mxu0 %v257
    %312 = vmatpush.msra.mxu0 %v255
    %313 = vmatpush.msra.mxu0 %v253
    %314 = vmatmul.f32.gmra.mxu0 %v276
    %v315 = vpop.f32.mrf.mxu0
    %v316 = vadd.f32 %v271, %v315
    %317 = vdwg.mxu0
    %v318 = vmax.f32 %v296, 0.0
    %v319 = vmax.f32 %v316, 0.0
    %v320 = vld [vmem:[#allocation8] sm:$0xff]
    %v321 = vld [vmem:[#allocation8 + $0x8] sm:$0xff]
    %v322 = vld [vmem:[#allocation8 + $0x10] sm:$0xff]
    %v323 = vld [vmem:[#allocation8 + $0x18] sm:$0xff]
    %v324 = vld [vmem:[#allocation8 + $0x20] sm:$0xff]
    %v325 = vld [vmem:[#allocation8 + $0x28] sm:$0xff]
    %v326 = vld [vmem:[#allocation8 + $0x30] sm:$0xff]
    %v327 = vld [vmem:[#allocation8 + $0x38] sm:$0xff]
    %v328 = vld [vmem:[#allocation8 + $0x40] sm:$0xff]
    %v329 = vld [vmem:[#allocation8 + $0x48] sm:$0xff]
    %v330 = vld [vmem:[#allocation8 + $0x50] sm:$0xff]
    %v331 = vld [vmem:[#allocation8 + $0x58] sm:$0xff]
    %v332 = vld [vmem:[#allocation8 + $0x60] sm:$0xff]
    %v333 = vld [vmem:[#allocation8 + $0x68] sm:$0xff]
    %v334 = vld [vmem:[#allocation8 + $0x70] sm:$0xff]
    %v335 = vld [vmem:[#allocation8 + $0x78] sm:$0xff]
    %v336 = vld [vmem:[#allocation8 + $0x80] sm:$0xff]
    %v337 = vld [vmem:[#allocation8 + $0x88] sm:$0xff]
    %v338 = vld [vmem:[#allocation8 + $0x90] sm:$0xff]
    %v339 = vld [vmem:[%s6] sm:$0x1]
    %v341 = vperm.slane %v339, 0
    %vm343 = vcmask 195584
    %v345 = vsel %vm343, %v319, 0
    %347 = vmatpush.msra.mxu0 %v335
    %348 = vmatpush.msra.mxu0 %v334
    %349 = vmatpush.msra.mxu0 %v333
    %350 = vmatpush.msra.mxu0 %v332
    %351 = vmatpush.msra.mxu0 %v331
    %352 = vmatpush.msra.mxu0 %v330
    %353 = vmatpush.msra.mxu0 %v329
    %354 = vmatpush.msra.mxu0 %v328
    %355 = vmatpush.msra.mxu0 %v327
    %356 = vmatpush.msra.mxu0 %v326
    %357 = vmatpush.msra.mxu0 %v325
    %358 = vmatpush.msra.mxu0 %v324
    %359 = vmatpush.msra.mxu0 %v323
    %360 = vmatpush.msra.mxu0 %v322
    %361 = vmatpush.msra.mxu0 %v321
    %362 = vmatpush.msra.mxu0 %v320
    %363 = vmatmul.f32.gmra.mxu0 %v318
    %v364 = vpop.f32.mrf.mxu0
    %v365 = vadd.f32 %v341, %v364
    %366 = vdwg.mxu0
    %367 = vmatpush.msra.mxu0 0.0
    %368 = vmatpush.msra.mxu0 0.0
    %369 = vmatpush.msra.mxu0 0.0
    %370 = vmatpush.msra.mxu0 0.0
    %371 = vmatpush.msra.mxu0 0.0
    %372 = vmatpush.msra.mxu0 0.0
    %373 = vmatpush.msra.mxu0 0.0
    %374 = vmatpush.msra.mxu0 0.0
    %375 = vmatpush.msra.mxu0 0.0
    %376 = vmatpush.msra.mxu0 0.0
    %377 = vmatpush.msra.mxu0 0.0
    %378 = vmatpush.msra.mxu0 0.0
    %379 = vmatpush.msra.mxu0 0.0
    %380 = vmatpush.msra.mxu0 %v338
    %381 = vmatpush.msra.mxu0 %v337
    %382 = vmatpush.msra.mxu0 %v336
    %383 = vmatmul.f32.gmra.mxu0 %v345
    %v384 = vpop.f32.mrf.mxu0
    %v385 = vadd.f32 %v365, %v384
    %386 = vdwg.mxu0
    %387 = vst [vmem:[#allocation10] sm:$0xff] %v385
    // Predicated region
    $region46: #{tpu_custom_call.1} parent=1 // pred_check
      _
    $region47: #{tpu_custom_call.1} parent=1 // pred_check_branch
      %389 = sbr.rel (0) target = $region49
    $region48: #{tpu_custom_call.1} parent=1 // pred_region
      %391 = vsyncadd [#allocation4], 0
      %s393 = sshll.u32 [#allocation10], 4
      %s394 = int_to_ptr.vmem [resolvable:$true] %s393
      %s395 = sshll.u32 %s7, 4
      %s396 = int_to_ptr.hbm [resolvable:$true] %s395
      %398 = dma.vmem_to_hbm [thread:$0]  %s394, 128, %s396, [#allocation4]
    $region49: #{tpu_custom_call.1} parent=1 // pred_fallthru
      _
    // Predicated region
    $region50: #{tpu_custom_call.1} parent=1 // pred_check
      _
    $region51: #{tpu_custom_call.1} parent=1 // pred_check_branch
      %400 = sbr.rel (0) target = $region53
    $region52: #{tpu_custom_call.1} parent=1 // pred_region
      %402 = dma.done [#allocation4], 128
    $region53: #{tpu_custom_call.1} parent=1 // pred_fallthru
      _
    %403 = vsyncpa [#allocation3], 1
    %404 = vsyncpa [#allocation6], 1
    %405 = vsyncpa [#allocation9], 1
    %406 = vsyncpa [#allocation4], 1

</llo_original>
